<compile_context>
chip_gen: v5e
topology: v5e:2x2
jax: 0.10.0
libtpu: 0.0.40
codegen_flags: <defaults>
</compile_context>

<pallas_src>
import jax
import jax.numpy as jnp
from jax.experimental import pallas as pl
from jax.experimental.pallas import tpu as pltpu

EPS = 1e-3    # BatchNorm2d(eps=0.001)
CT = 128      # channel tile (sublane axis); C=200 -> 2 tiles (2nd partial, OK)


def _bn_train_kernel(x_ref, gamma_ref, beta_ref, o_ref):
    # x_ref: (CT, HW)  -- channels on sublanes, spatial (N*H*W) on lanes.
    x = x_ref[...].astype(jnp.float32)
    m = x.shape[1]                       # true per-channel count (static, 196)
    inv_m = 1.0 / m

    # One-pass stats: only the (CT,1) accumulators stay live besides x itself,
    # no full-block `centered` materialized before the variance reduction.
    s1 = jnp.sum(x, axis=1, keepdims=True)           # (CT, 1)
    s2 = jnp.sum(x * x, axis=1, keepdims=True)       # (CT, 1)
    mean = s1 * inv_m
    var = jnp.maximum(s2 * inv_m - mean * mean, 0.0)  # biased var, guarded
    inv_std = jax.lax.rsqrt(var + EPS)

    # Fold affine params into per-channel scale/shift -> 2 VALU ops / element.
    scale = inv_std * gamma_ref[...]                  # (CT, 1)
    shift = beta_ref[...] - mean * scale              # (CT, 1)
    o_ref[...] = (x * scale + shift).astype(o_ref.dtype)


def batchnorm2d(x_nchw, gamma, beta):
    """BatchNorm2d forward (training mode, batch stats), PyTorch semantics."""
    N, C, H, W = x_nchw.shape
    HW = N * H * W

    if N == 1:
        # NCHW with N==1: (C, H*W) is a free reshape (no transpose, no copy).
        x2d = x_nchw.reshape(C, HW)
    else:
        # General N: channels must lead so stats reduce over N*H*W per channel.
        x2d = jnp.transpose(x_nchw, (1, 0, 2, 3)).reshape(C, HW)

    g2d = gamma.reshape(C, 1).astype(jnp.float32)
    b2d = beta.reshape(C, 1).astype(jnp.float32)

    grid = (pl.cdiv(C, CT),)
    y2d = pl.pallas_call(
        _bn_train_kernel,
        out_shape=jax.ShapeDtypeStruct((C, HW), x_nchw.dtype),
        grid=grid,
        in_specs=[
            pl.BlockSpec((CT, HW), lambda i: (i, 0)),
            pl.BlockSpec((CT, 1), lambda i: (i, 0)),
            pl.BlockSpec((CT, 1), lambda i: (i, 0)),
        ],
        out_specs=pl.BlockSpec((CT, HW), lambda i: (i, 0)),
        compiler_params=pltpu.CompilerParams(
            dimension_semantics=("parallel",)),   # v7x: one channel tile per TC
    )(x2d, g2d, b2d)

    if N == 1:
        return y2d.reshape(N, C, H, W)
    return jnp.transpose(y2d.reshape(C, N, H, W), (1, 0, 2, 3))

# TODO(synk): running_mean / running_var updates (momentum=0.01, unbiased var)
# are not produced; only the normalized forward output is computed.


def _reference(x_nchw, gamma, beta):
    mean = jnp.mean(x_nchw, axis=(0, 2, 3), keepdims=True)
    var = jnp.mean((x_nchw - mean) ** 2, axis=(0, 2, 3), keepdims=True)
    g = gamma.reshape(1, -1, 1, 1)
    b = beta.reshape(1, -1, 1, 1)
    return (x_nchw - mean) * jax.lax.rsqrt(var + EPS) * g + b


if __name__ == "__main__":
    key = jax.random.PRNGKey(0)
    kx, kg, kb = jax.random.split(key, 3)

    N, C, H, W = 1, 200, 14, 14   # shape from the PyTorch module
    x = jax.random.normal(kx, (N, C, H, W), dtype=jnp.float32)
    gamma = 1.0 + 0.1 * jax.random.normal(kg, (C,), dtype=jnp.float32)
    beta = 0.1 * jax.random.normal(kb, (C,), dtype=jnp.float32)

    y = batchnorm2d(x, gamma, beta)
    y = jax.block_until_ready(y)

    y_ref = _reference(x, gamma, beta)
    assert y.shape == (N, C, H, W)
    assert jnp.max(jnp.abs(y - y_ref)) < 1e-4, "mismatch vs reference"

    print("KERNEL_OK")
</pallas_src>

<mosaic_0001>
module attributes {stable_mosaic.version = 11 : i64} {
  func.func @_bn_train_kernel(%arg0: i32, %arg1: memref<128x196xf32, #tpu.memory_space<vmem>>, %arg2: memref<128x1xf32, #tpu.memory_space<vmem>>, %arg3: memref<128x1xf32, #tpu.memory_space<vmem>>, %arg4: memref<128x196xf32, #tpu.memory_space<vmem>>) attributes {dimension_semantics = [#tpu.dimension_semantics<parallel>], iteration_bounds = array<i64: 2>, scalar_prefetch = 0 : i64, scratch_operands = 0 : i64, tpu.core_type = #tpu.core_type<tc>, window_params = [{transform_indices = @transform_0, window_bounds = array<i64: 128, 196>}, {transform_indices = @transform_1, window_bounds = array<i64: 128, 1>}, {transform_indices = @transform_2, window_bounds = array<i64: 128, 1>}, {transform_indices = @transform_3, window_bounds = array<i64: 128, 196>}]} {
    %c0 = arith.constant 0 : index
    %c0_0 = arith.constant 0 : index
    %0 = vector.load %arg1[%c0, %c0_0] : memref<128x196xf32, #tpu.memory_space<vmem>>, vector<128x196xf32>
    %cst = arith.constant dense<0.000000e+00> : vector<128xf32>
    %1 = vector.multi_reduction <add>, %0, %cst [1] : vector<128x196xf32> to vector<128xf32>
    %2 = vector.shape_cast %1 : vector<128xf32> to vector<128x1xf32>
    %3 = arith.mulf %0, %0 : vector<128x196xf32>
    %cst_1 = arith.constant dense<0.000000e+00> : vector<128xf32>
    %4 = vector.multi_reduction <add>, %3, %cst_1 [1] : vector<128x196xf32> to vector<128xf32>
    %5 = vector.shape_cast %4 : vector<128xf32> to vector<128x1xf32>
    %cst_2 = arith.constant 0.00510204071 : f32
    %6 = vector.broadcast %cst_2 : f32 to vector<128x1xf32>
    %7 = arith.mulf %2, %6 : vector<128x1xf32>
    %cst_3 = arith.constant 0.00510204071 : f32
    %8 = vector.broadcast %cst_3 : f32 to vector<128x1xf32>
    %9 = arith.mulf %5, %8 : vector<128x1xf32>
    %10 = arith.mulf %7, %7 : vector<128x1xf32>
    %11 = arith.subf %9, %10 : vector<128x1xf32>
    %cst_4 = arith.constant 0.000000e+00 : f32
    %12 = vector.broadcast %cst_4 : f32 to vector<128x1xf32>
    %13 = arith.maximumf %11, %12 : vector<128x1xf32>
    %cst_5 = arith.constant 1.000000e-03 : f32
    %14 = vector.broadcast %cst_5 : f32 to vector<128x1xf32>
    %15 = arith.addf %13, %14 : vector<128x1xf32>
    %16 = math.rsqrt %15 : vector<128x1xf32>
    %c0_6 = arith.constant 0 : index
    %c0_7 = arith.constant 0 : index
    %17 = vector.load %arg2[%c0_6, %c0_7] : memref<128x1xf32, #tpu.memory_space<vmem>>, vector<128x1xf32>
    %18 = arith.mulf %16, %17 : vector<128x1xf32>
    %c0_8 = arith.constant 0 : index
    %c0_9 = arith.constant 0 : index
    %19 = vector.load %arg3[%c0_8, %c0_9] : memref<128x1xf32, #tpu.memory_space<vmem>>, vector<128x1xf32>
    %20 = arith.mulf %7, %18 : vector<128x1xf32>
    %21 = arith.subf %19, %20 : vector<128x1xf32>
    %22 = vector.broadcast %18 : vector<128x1xf32> to vector<128x196xf32>
    %23 = arith.mulf %0, %22 : vector<128x196xf32>
    %24 = vector.broadcast %21 : vector<128x1xf32> to vector<128x196xf32>
    %25 = arith.addf %23, %24 : vector<128x196xf32>
    %c0_10 = arith.constant 0 : index
    %c0_11 = arith.constant 0 : index
    %26 = vector.load %arg4[%c0_10, %c0_11] : memref<128x196xf32, #tpu.memory_space<vmem>>, vector<128x196xf32>
    tpu.vector_store %arg4[%c0_10, %c0_11], %25 {strides = array<i32>} : memref<128x196xf32, #tpu.memory_space<vmem>>, vector<128x196xf32>,
    return
  }
  func.func @transform_0(%arg0: i32) -> (i32, i32) {
    %c0_i32 = arith.constant 0 : i32
    %c0_i32_0 = arith.constant 0 : i32
    return %arg0, %c0_i32 : i32, i32
  }
  func.func @transform_1(%arg0: i32) -> (i32, i32) {
    %c0_i32 = arith.constant 0 : i32
    %c0_i32_0 = arith.constant 0 : i32
    return %arg0, %c0_i32 : i32, i32
  }
  func.func @transform_2(%arg0: i32) -> (i32, i32) {
    %c0_i32 = arith.constant 0 : i32
    %c0_i32_0 = arith.constant 0 : i32
    return %arg0, %c0_i32 : i32, i32
  }
  func.func @transform_3(%arg0: i32) -> (i32, i32) {
    %c0_i32 = arith.constant 0 : i32
    %c0_i32_0 = arith.constant 0 : i32
    return %arg0, %c0_i32 : i32, i32
  }
}

</mosaic_0001>

<llo_original>
// kernel: tpu_custom_call.1
$region0: #{tpu_custom_call.1}
  #allocation0 [shape = 'u32[]', space=smem, size = 0x4, offset = 0x4, fixed_abs, tag = 'smem constant byte address 0x4 - core index']
  #allocation1 [shape = 'u32[72,128]{1,0:T(1,128)}', space=vmem, size = 0x9000, scoped, tag = 'internal scratch']
  %s0 = inlined_call_operand.vmem [shape: f32[200,196], index: 0, kind: input, shape index: {}]
  %s1 = inlined_call_operand.vmem [shape: f32[200,1], index: 1, kind: input, shape index: {}]
  %s2 = inlined_call_operand.vmem [shape: f32[200,1], index: 2, kind: input, shape index: {}]
  %s3 = inlined_call_operand.hbm [shape: f32[200,196], index: 3, kind: output, shape index: {}]
  %s4 = sld [smem:[#allocation0]]
  $region45: #{tpu_custom_call.1} parent=0
    _
  %s6 = ssub.s32 1, %s4
  %s7 = scalar_select 0, %s6, %s4
  $region1: #{tpu_custom_call.1} parent=0
    #allocation2 [shape = 'u8[262144]{0}', space=vmem, size = 0x40000, scoped, tag = 'output window, operand 0']
    #allocation3 [shape = 's32[2]{0}', space=sflag, size = 0x8, scoped, tag = 'scoped memory for tpu_custom_call.1']
    %8 = vsyncpa [#allocation3], 0
    %s9 = scalar_lea.sflag [#allocation3], 1
    %10 = vsyncpa %s9, 0
    loop: start=0, step=1, limit=4
    $region2: #{tpu_custom_call.1} parent=1 // loop_pre_header
      _
    $region3: #{tpu_custom_call.1} parent=1 // loop_header
      %s12 = sphi 0, %s16
      %p13 = scmp.ge.s32.totalorder %s12, 4
      %s22 = sphi 0, %s24
      %s25 = sphi 0, %s22
      %s26 = sphi 0, %s25
      %s42 = sphi 0, %s26
      %s48 = sphi 0, %s50
      %s51 = sphi 0, %s48
      %s52 = sphi 0, %s51
      %s68 = sphi 0, %s52
      %s74 = sphi 0, %s76
      %s77 = sphi 0, %s74
      %s78 = sphi 0, %s77
      %s94 = sphi 0, %s78
      %s100 = sphi 0, %s102
      %s103 = sphi 0, %s100
      %s104 = sphi 0, %s103
      %s120 = sphi 0, %s104
    $region4: #{tpu_custom_call.1} parent=1 // loop_header_branch
      %15 = sbr.rel (%p13) target = $region8
    $region5: #{tpu_custom_call.1} parent=1 // loop_body
      %s17 = ssub.s32 %s12, 1
      %s18 = ssub.s32 %s12, 2
      %s19 = sadd.s32 %s12, 1
      %s20 = ssub.s32 %s12, %s19
      %p21 = scmp.eq.s32.totalorder %s20, 0
      %s23 = sadd.s32 %s22, 1
      %s24 = scalar_select %p21, %s22, %s23
      %p27 = pneg %p21
      %p28 = scmp.eq.s32.totalorder %s12, 1
      %p29 = por %p27, %p28
      %p30 = scmp.ne.s32.totalorder %s22, %s25
      %p31 = scmp.eq.s32.totalorder %s12, 0
      %p32 = por %p30, %p31
      %p33 = scmp.ne.s32.totalorder %s22, %s25
      %p34 = scmp.eq.s32.totalorder %s17, 1
      %p35 = por %p33, %p34
      %p36 = scmp.ne.s32.totalorder %s25, %s26
      %p37 = scmp.eq.s32.totalorder %s17, 0
      %p38 = por %p36, %p37
      %p39 = scmp.ne.s32.totalorder %s25, %s26
      %p40 = scmp.eq.s32.totalorder %s18, 1
      %p41 = por %p39, %p40
      %p43 = scmp.ne.s32.totalorder %s26, %s42
      %p44 = scmp.eq.s32.totalorder %s18, 0
      %p45 = por %p43, %p44
      %s46 = ssub.s32 %s12, %s19
      %p47 = scmp.eq.s32.totalorder %s46, 0
      %s49 = sadd.s32 %s48, 1
      %s50 = scalar_select %p47, %s48, %s49
      %p53 = pneg %p47
      %p54 = scmp.eq.s32.totalorder %s12, 1
      %p55 = por %p53, %p54
      %p56 = scmp.ne.s32.totalorder %s48, %s51
      %p57 = scmp.eq.s32.totalorder %s12, 0
      %p58 = por %p56, %p57
      %p59 = scmp.ne.s32.totalorder %s48, %s51
      %p60 = scmp.eq.s32.totalorder %s17, 1
      %p61 = por %p59, %p60
      %p62 = scmp.ne.s32.totalorder %s51, %s52
      %p63 = scmp.eq.s32.totalorder %s17, 0
      %p64 = por %p62, %p63
      %p65 = scmp.ne.s32.totalorder %s51, %s52
      %p66 = scmp.eq.s32.totalorder %s18, 1
      %p67 = por %p65, %p66
      %p69 = scmp.ne.s32.totalorder %s52, %s68
      %p70 = scmp.eq.s32.totalorder %s18, 0
      %p71 = por %p69, %p70
      %s72 = ssub.s32 %s12, %s19
      %p73 = scmp.eq.s32.totalorder %s72, 0
      %s75 = sadd.s32 %s74, 1
      %s76 = scalar_select %p73, %s74, %s75
      %p79 = pneg %p73
      %p80 = scmp.eq.s32.totalorder %s12, 1
      %p81 = por %p79, %p80
      %p82 = scmp.ne.s32.totalorder %s74, %s77
      %p83 = scmp.eq.s32.totalorder %s12, 0
      %p84 = por %p82, %p83
      %p85 = scmp.ne.s32.totalorder %s74, %s77
      %p86 = scmp.eq.s32.totalorder %s17, 1
      %p87 = por %p85, %p86
      %p88 = scmp.ne.s32.totalorder %s77, %s78
      %p89 = scmp.eq.s32.totalorder %s17, 0
      %p90 = por %p88, %p89
      %p91 = scmp.ne.s32.totalorder %s77, %s78
      %p92 = scmp.eq.s32.totalorder %s18, 1
      %p93 = por %p91, %p92
      %p95 = scmp.ne.s32.totalorder %s78, %s94
      %p96 = scmp.eq.s32.totalorder %s18, 0
      %p97 = por %p95, %p96
      %s98 = ssub.s32 %s12, %s19
      %p99 = scmp.eq.s32.totalorder %s98, 0
      %s101 = sadd.s32 %s100, 1
      %s102 = scalar_select %p99, %s100, %s101
      %p105 = pneg %p99
      %p106 = scmp.eq.s32.totalorder %s12, 1
      %p107 = por %p105, %p106
      %p108 = scmp.ne.s32.totalorder %s100, %s103
      %p109 = scmp.eq.s32.totalorder %s12, 0
      %p110 = por %p108, %p109
      %p111 = scmp.ne.s32.totalorder %s100, %s103
      %p112 = scmp.eq.s32.totalorder %s17, 1
      %p113 = por %p111, %p112
      %p114 = scmp.ne.s32.totalorder %s103, %s104
      %p115 = scmp.eq.s32.totalorder %s17, 0
      %p116 = por %p114, %p115
      %p117 = scmp.ne.s32.totalorder %s103, %s104
      %p118 = scmp.eq.s32.totalorder %s18, 1
      %p119 = por %p117, %p118
      %p121 = scmp.ne.s32.totalorder %s104, %s120
      %p122 = scmp.eq.s32.totalorder %s18, 0
      %p123 = por %p121, %p122
      %p124 = scmp.le.s32.totalorder 1, %s12
      %p125 = scmp.lt.s32.totalorder %s12, 3
      %p126 = pnand %p124, %p125
      %p127 = pneg %p126
      // Predicated region
      $region9: #{tpu_custom_call.1} parent=5 // pred_check
        _
      $region10: #{tpu_custom_call.1} parent=5 // pred_check_branch
        %129 = sbr.rel (%p126) target = $region12
      $region11: #{tpu_custom_call.1} parent=5 // pred_region
        %s130 = ssub.s32 %s12, 1
      $region12: #{tpu_custom_call.1} parent=5 // pred_fallthru
        _
      %p131 = scmp.lt.s32.totalorder %s12, 2
      // Predicated region
      $region13: #{tpu_custom_call.1} parent=5 // pred_check
        %p132 = pneg %p131
      $region14: #{tpu_custom_call.1} parent=5 // pred_check_branch
        %134 = sbr.rel (%p132) target = $region16
      $region15: #{tpu_custom_call.1} parent=5 // pred_region
        // Predicated region
        $region17: #{tpu_custom_call.1} parent=15 // pred_check
          %p135 = pneg %p32
        $region18: #{tpu_custom_call.1} parent=15 // pred_check_branch
          %137 = sbr.rel (%p135) target = $region20
        $region19: #{tpu_custom_call.1} parent=15 // pred_region
          %s138 = smul.u32 16, %s12
          %s139 = ssub.s32 25, %s138
          %p140 = scmp.lt.s32.totalorder %s139, 16
          %s141 = scalar_select %p140, %s139, 16
          %s142 = smul.u32 8, %s141
          %s143 = smul.u32 %s142, 2
          %p144 = scmp.lt.s32.totalorder %s138, 24
          %s145 = scalar_select %p144, %s138, 24
          %s146 = smul.addr %s145, 2
          %s147 = smul.addr %s146, 8
          %s148 = scalar_lea.vmem %s0, %s147
          %s149 = smul.u32 16, %s12
          %s150 = ssub.s32 25, %s149
          %p151 = scmp.lt.s32.totalorder %s150, 16
          %s152 = scalar_select %p151, %s150, 16
          %s153 = smul.u32 8, %s152
          %s154 = smul.u32 %s153, 2
        $region20: #{tpu_custom_call.1} parent=15 // pred_fallthru
          _
        // Predicated region
        $region21: #{tpu_custom_call.1} parent=15 // pred_check
          %p155 = pneg %p58
        $region22: #{tpu_custom_call.1} parent=15 // pred_check_branch
          %157 = sbr.rel (%p155) target = $region24
        $region23: #{tpu_custom_call.1} parent=15 // pred_region
          %s158 = smul.u32 16, %s12
          %s159 = ssub.s32 25, %s158
          %p160 = scmp.lt.s32.totalorder %s159, 16
          %s161 = scalar_select %p160, %s159, 16
          %s162 = smul.u32 8, %s161
          %p163 = scmp.lt.s32.totalorder %s158, 24
          %s164 = scalar_select %p163, %s158, 24
          %s165 = smul.addr %s164, 8
          %s166 = scalar_lea.vmem %s1, %s165
          %s167 = smul.u32 16, %s12
          %s168 = ssub.s32 25, %s167
          %p169 = scmp.lt.s32.totalorder %s168, 16
          %s170 = scalar_select %p169, %s168, 16
          %s171 = smul.u32 8, %s170
        $region24: #{tpu_custom_call.1} parent=15 // pred_fallthru
          _
        // Predicated region
        $region25: #{tpu_custom_call.1} parent=15 // pred_check
          %p172 = pneg %p84
        $region26: #{tpu_custom_call.1} parent=15 // pred_check_branch
          %174 = sbr.rel (%p172) target = $region28
        $region27: #{tpu_custom_call.1} parent=15 // pred_region
          %s175 = smul.u32 16, %s12
          %s176 = ssub.s32 25, %s175
          %p177 = scmp.lt.s32.totalorder %s176, 16
          %s178 = scalar_select %p177, %s176, 16
          %s179 = smul.u32 8, %s178
          %p180 = scmp.lt.s32.totalorder %s175, 24
          %s181 = scalar_select %p180, %s175, 24
          %s182 = smul.addr %s181, 8
          %s183 = scalar_lea.vmem %s2, %s182
          %s184 = smul.u32 16, %s12
          %s185 = ssub.s32 25, %s184
          %p186 = scmp.lt.s32.totalorder %s185, 16
          %s187 = scalar_select %p186, %s185, 16
          %s188 = smul.u32 8, %s187
        $region28: #{tpu_custom_call.1} parent=15 // pred_fallthru
          _
      $region16: #{tpu_custom_call.1} parent=5 // pred_fallthru
        _
      %p189 = scmp.le.s32.totalorder 1, %s12
      %p190 = scmp.lt.s32.totalorder %s12, 3
      %p191 = pnand %p189, %p190
      %p192 = pneg %p191
      // Predicated region
      $region29: #{tpu_custom_call.1} parent=5 // pred_check
        _
      $region30: #{tpu_custom_call.1} parent=5 // pred_check_branch
        %194 = sbr.rel (%p191) target = $region32
      $region31: #{tpu_custom_call.1} parent=5 // pred_region
        %s195 = ssub.s32 %s12, 1
        %s196 = smul.u32 16, %s17
        %s197 = ssub.s32 25, %s196
        %p198 = scmp.lt.s32.totalorder %s197, 16
        %s199 = scalar_select %p198, %s197, 16
        %s200 = smul.u32 8, %s199
        %s201 = smul.u32 %s200, 2
        %p202 = scmp.lt.s32.totalorder %s196, 24
        %s203 = scalar_select %p202, %s196, 24
        %s204 = smul.addr %s203, 2
        %s205 = smul.addr %s204, 8
        %s206 = scalar_lea.vmem %s0, %s205
        %p207 = pneg %p38
        %p208 = pneg %p35
        %s209 = smul.u32 16, %s17
        %s210 = ssub.s32 25, %s209
        %p211 = scmp.lt.s32.totalorder %s210, 16
        %s212 = scalar_select %p211, %s210, 16
        %s213 = smul.u32 8, %s212
        %p214 = scmp.lt.s32.totalorder %s209, 24
        %s215 = scalar_select %p214, %s209, 24
        %s216 = smul.addr %s215, 8
        %s217 = scalar_lea.vmem %s1, %s216
        %p218 = pneg %p64
        %p219 = pneg %p61
        %s220 = smul.u32 16, %s17
        %s221 = ssub.s32 25, %s220
        %p222 = scmp.lt.s32.totalorder %s221, 16
        %s223 = scalar_select %p222, %s221, 16
        %s224 = smul.u32 8, %s223
        %p225 = scmp.lt.s32.totalorder %s220, 24
        %s226 = scalar_select %p225, %s220, 24
        %s227 = smul.addr %s226, 8
        %s228 = scalar_lea.vmem %s2, %s227
        %p229 = pneg %p90
        %p230 = pneg %p87
        %p231 = pneg %p116
        %p232 = pneg %p113
        %s233 = sand.u32 %s103, 1
        %s234 = scalar_lea.sflag [#allocation3], %s233
        %s235 = sand.u32 %s103, 1
        %s236 = smul.addr %s235, 256
        %s237 = scalar_lea.vmem [#allocation2], %s236
        %s238 = smul.u32 16, %s17
        %s239 = ssub.s32 25, %s238
        %p240 = scmp.lt.s32.totalorder %s239, 16
        %s241 = scalar_select %p240, %s239, 16
        %s242 = smul.u32 8, %s241
        %s243 = smul.u32 %s242, 2
        %p244 = scmp.lt.s32.totalorder %s238, 24
        %s245 = scalar_select %p244, %s238, 24
        %s246 = smul.addr %s245, 2
        %s247 = smul.addr %s246, 8
        %s248 = scalar_lea.vmem %s0, %s247
        %s249 = smul.u32 16, %s17
        %s250 = ssub.s32 25, %s249
        %p251 = scmp.lt.s32.totalorder %s250, 16
        %s252 = scalar_select %p251, %s250, 16
        %s253 = smul.u32 8, %s252
        %s254 = smul.u32 %s253, 2
        %s255 = smul.u32 16, %s17
        %s256 = ssub.s32 25, %s255
        %p257 = scmp.lt.s32.totalorder %s256, 16
        %s258 = scalar_select %p257, %s256, 16
        %s259 = smul.u32 8, %s258
        %p260 = scmp.lt.s32.totalorder %s255, 24
        %s261 = scalar_select %p260, %s255, 24
        %s262 = smul.addr %s261, 8
        %s263 = scalar_lea.vmem %s1, %s262
        %s264 = smul.u32 16, %s17
        %s265 = ssub.s32 25, %s264
        %p266 = scmp.lt.s32.totalorder %s265, 16
        %s267 = scalar_select %p266, %s265, 16
        %s268 = smul.u32 8, %s267
        %s269 = smul.u32 16, %s17
        %s270 = ssub.s32 25, %s269
        %p271 = scmp.lt.s32.totalorder %s270, 16
        %s272 = scalar_select %p271, %s270, 16
        %s273 = smul.u32 8, %s272
        %p274 = scmp.lt.s32.totalorder %s269, 24
        %s275 = scalar_select %p274, %s269, 24
        %s276 = smul.addr %s275, 8
        %s277 = scalar_lea.vmem %s2, %s276
        %s278 = smul.u32 16, %s17
        %s279 = ssub.s32 25, %s278
        %p280 = scmp.lt.s32.totalorder %s279, 16
        %s281 = scalar_select %p280, %s279, 16
        %s282 = smul.u32 8, %s281
        %s283 = smul.u32 16, %s17
        %s284 = ssub.s32 25, %s283
        %p285 = scmp.lt.s32.totalorder %s284, 16
        %s286 = scalar_select %p285, %s284, 16
        %s287 = smul.u32 8, %s286
        %s288 = smul.u32 %s287, 2
        %v289 = vld [vmem:[%s248] sm:$0xff]
        %v290 = vld [vmem:[%s248 + $0x8] sm:$0xff]
        %v291 = vld [vmem:[%s248 + $0x10] sm:$0xff]
        %v292 = vld [vmem:[%s248 + $0x18] sm:$0xff]
        %v293 = vld [vmem:[%s248 + $0x20] sm:$0xff]
        %v294 = vld [vmem:[%s248 + $0x28] sm:$0xff]
        %v295 = vld [vmem:[%s248 + $0x30] sm:$0xff]
        %v296 = vld [vmem:[%s248 + $0x38] sm:$0xff]
        %v297 = vld [vmem:[%s248 + $0x40] sm:$0xff]
        %v298 = vld [vmem:[%s248 + $0x48] sm:$0xff]
        %v299 = vld [vmem:[%s248 + $0x50] sm:$0xff]
        %v300 = vld [vmem:[%s248 + $0x58] sm:$0xff]
        %v301 = vld [vmem:[%s248 + $0x60] sm:$0xff]
        %v302 = vld [vmem:[%s248 + $0x68] sm:$0xff]
        %v303 = vld [vmem:[%s248 + $0x70] sm:$0xff]
        %v304 = vld [vmem:[%s248 + $0x78] sm:$0xff]
        %v305 = vld [vmem:[%s248 + $0x80] sm:$0xff]
        %v306 = vld [vmem:[%s248 + $0x88] sm:$0xff]
        %v307 = vld [vmem:[%s248 + $0x90] sm:$0xff]
        %v308 = vld [vmem:[%s248 + $0x98] sm:$0xff]
        %v309 = vld [vmem:[%s248 + $0xa0] sm:$0xff]
        %v310 = vld [vmem:[%s248 + $0xa8] sm:$0xff]
        %v311 = vld [vmem:[%s248 + $0xb0] sm:$0xff]
        %v312 = vld [vmem:[%s248 + $0xb8] sm:$0xff]
        %v313 = vld [vmem:[%s248 + $0xc0] sm:$0xff]
        %v314 = vld [vmem:[%s248 + $0xc8] sm:$0xff]
        %v315 = vld [vmem:[%s248 + $0xd0] sm:$0xff]
        %v316 = vld [vmem:[%s248 + $0xd8] sm:$0xff]
        %v317 = vld [vmem:[%s248 + $0xe0] sm:$0xff]
        %v318 = vld [vmem:[%s248 + $0xe8] sm:$0xff]
        %v319 = vld [vmem:[%s248 + $0xf0] sm:$0xff]
        %v320 = vld [vmem:[%s248 + $0xf8] sm:$0xff]
        %vm321 = vcmask 556032
        %v322 = vsel %vm321, %v290, 0.0
        %v323 = vadd.f32 %v289, %v322
        %324 = vadd.xlane.f32.xlu0 %v323
        %v325 = vpop.xlane.xlu0 %324
        %v326 = vsel %vm321, %v292, 0.0
        %v327 = vadd.f32 %v291, %v326
        %328 = vadd.xlane.f32.xlu0 %v327
        %v329 = vpop.xlane.xlu0 %328
        %v330 = vsel %vm321, %v294, 0.0
        %v331 = vadd.f32 %v293, %v330
        %332 = vadd.xlane.f32.xlu0 %v331
        %v333 = vpop.xlane.xlu0 %332
        %v334 = vsel %vm321, %v296, 0.0
        %v335 = vadd.f32 %v295, %v334
        %336 = vadd.xlane.f32.xlu0 %v335
        %v337 = vpop.xlane.xlu0 %336
        %v338 = vsel %vm321, %v298, 0.0
        %v339 = vadd.f32 %v297, %v338
        %340 = vadd.xlane.f32.xlu0 %v339
        %v341 = vpop.xlane.xlu0 %340
        %v342 = vsel %vm321, %v300, 0.0
        %v343 = vadd.f32 %v299, %v342
        %344 = vadd.xlane.f32.xlu0 %v343
        %v345 = vpop.xlane.xlu0 %344
        %v346 = vsel %vm321, %v302, 0.0
        %v347 = vadd.f32 %v301, %v346
        %348 = vadd.xlane.f32.xlu0 %v347
        %v349 = vpop.xlane.xlu0 %348
        %v350 = vsel %vm321, %v304, 0.0
        %v351 = vadd.f32 %v303, %v350
        %352 = vadd.xlane.f32.xlu0 %v351
        %v353 = vpop.xlane.xlu0 %352
        %v354 = vsel %vm321, %v306, 0.0
        %v355 = vadd.f32 %v305, %v354
        %356 = vadd.xlane.f32.xlu0 %v355
        %v357 = vpop.xlane.xlu0 %356
        %v358 = vsel %vm321, %v308, 0.0
        %v359 = vadd.f32 %v307, %v358
        %360 = vadd.xlane.f32.xlu0 %v359
        %v361 = vpop.xlane.xlu0 %360
        %v362 = vsel %vm321, %v310, 0.0
        %v363 = vadd.f32 %v309, %v362
        %364 = vadd.xlane.f32.xlu0 %v363
        %v365 = vpop.xlane.xlu0 %364
        %v366 = vsel %vm321, %v312, 0.0
        %v367 = vadd.f32 %v311, %v366
        %368 = vadd.xlane.f32.xlu0 %v367
        %v369 = vpop.xlane.xlu0 %368
        %v370 = vsel %vm321, %v314, 0.0
        %v371 = vadd.f32 %v313, %v370
        %372 = vadd.xlane.f32.xlu0 %v371
        %v373 = vpop.xlane.xlu0 %372
        %v374 = vsel %vm321, %v316, 0.0
        %v375 = vadd.f32 %v315, %v374
        %376 = vadd.xlane.f32.xlu0 %v375
        %v377 = vpop.xlane.xlu0 %376
        %v378 = vsel %vm321, %v318, 0.0
        %v379 = vadd.f32 %v317, %v378
        %380 = vadd.xlane.f32.xlu0 %v379
        %v381 = vpop.xlane.xlu0 %380
        %v382 = vsel %vm321, %v320, 0.0
        %v383 = vadd.f32 %v319, %v382
        %384 = vadd.xlane.f32.xlu0 %v383
        %v385 = vpop.xlane.xlu0 %384
        %v386 = vmul.f32 %v289, %v289
        %v387 = vmul.f32 %v290, %v290
        %v388 = vmul.f32 %v291, %v291
        %v389 = vmul.f32 %v292, %v292
        %v390 = vmul.f32 %v293, %v293
        %v391 = vmul.f32 %v294, %v294
        %v392 = vmul.f32 %v295, %v295
        %v393 = vmul.f32 %v296, %v296
        %v394 = vmul.f32 %v297, %v297
        %v395 = vmul.f32 %v298, %v298
        %v396 = vmul.f32 %v299, %v299
        %v397 = vmul.f32 %v300, %v300
        %v398 = vmul.f32 %v301, %v301
        %v399 = vmul.f32 %v302, %v302
        %v400 = vmul.f32 %v303, %v303
        %v401 = vmul.f32 %v304, %v304
        %v402 = vmul.f32 %v305, %v305
        %v403 = vmul.f32 %v306, %v306
        %v404 = vmul.f32 %v307, %v307
        %v405 = vmul.f32 %v308, %v308
        %v406 = vmul.f32 %v309, %v309
        %v407 = vmul.f32 %v310, %v310
        %v408 = vmul.f32 %v311, %v311
        %v409 = vmul.f32 %v312, %v312
        %v410 = vmul.f32 %v313, %v313
        %v411 = vmul.f32 %v314, %v314
        %v412 = vmul.f32 %v315, %v315
        %v413 = vmul.f32 %v316, %v316
        %v414 = vmul.f32 %v317, %v317
        %v415 = vmul.f32 %v318, %v318
        %v416 = vmul.f32 %v319, %v319
        %v417 = vmul.f32 %v320, %v320
        %v418 = vsel %vm321, %v387, 0.0
        %v419 = vadd.f32 %v386, %v418
        %420 = vadd.xlane.f32.xlu0 %v419
        %v421 = vpop.xlane.xlu0 %420
        %v422 = vsel %vm321, %v389, 0.0
        %v423 = vadd.f32 %v388, %v422
        %424 = vadd.xlane.f32.xlu0 %v423
        %v425 = vpop.xlane.xlu0 %424
        %v426 = vsel %vm321, %v391, 0.0
        %v427 = vadd.f32 %v390, %v426
        %428 = vadd.xlane.f32.xlu0 %v427
        %v429 = vpop.xlane.xlu0 %428
        %v430 = vsel %vm321, %v393, 0.0
        %v431 = vadd.f32 %v392, %v430
        %432 = vadd.xlane.f32.xlu0 %v431
        %v433 = vpop.xlane.xlu0 %432
        %v434 = vsel %vm321, %v395, 0.0
        %v435 = vadd.f32 %v394, %v434
        %436 = vadd.xlane.f32.xlu0 %v435
        %v437 = vpop.xlane.xlu0 %436
        %v438 = vsel %vm321, %v397, 0.0
        %v439 = vadd.f32 %v396, %v438
        %440 = vadd.xlane.f32.xlu0 %v439
        %v441 = vpop.xlane.xlu0 %440
        %v442 = vsel %vm321, %v399, 0.0
        %v443 = vadd.f32 %v398, %v442
        %444 = vadd.xlane.f32.xlu0 %v443
        %v445 = vpop.xlane.xlu0 %444
        %v446 = vsel %vm321, %v401, 0.0
        %v447 = vadd.f32 %v400, %v446
        %448 = vadd.xlane.f32.xlu0 %v447
        %v449 = vpop.xlane.xlu0 %448
        %v450 = vsel %vm321, %v403, 0.0
        %v451 = vadd.f32 %v402, %v450
        %452 = vadd.xlane.f32.xlu0 %v451
        %v453 = vpop.xlane.xlu0 %452
        %v454 = vsel %vm321, %v405, 0.0
        %v455 = vadd.f32 %v404, %v454
        %456 = vadd.xlane.f32.xlu0 %v455
        %v457 = vpop.xlane.xlu0 %456
        %v458 = vsel %vm321, %v407, 0.0
        %v459 = vadd.f32 %v406, %v458
        %460 = vadd.xlane.f32.xlu0 %v459
        %v461 = vpop.xlane.xlu0 %460
        %v462 = vsel %vm321, %v409, 0.0
        %v463 = vadd.f32 %v408, %v462
        %464 = vadd.xlane.f32.xlu0 %v463
        %v465 = vpop.xlane.xlu0 %464
        %v466 = vsel %vm321, %v411, 0.0
        %v467 = vadd.f32 %v410, %v466
        %468 = vadd.xlane.f32.xlu0 %v467
        %v469 = vpop.xlane.xlu0 %468
        %v470 = vsel %vm321, %v413, 0.0
        %v471 = vadd.f32 %v412, %v470
        %472 = vadd.xlane.f32.xlu0 %v471
        %v473 = vpop.xlane.xlu0 %472
        %v474 = vsel %vm321, %v415, 0.0
        %v475 = vadd.f32 %v414, %v474
        %476 = vadd.xlane.f32.xlu0 %v475
        %v477 = vpop.xlane.xlu0 %476
        %v478 = vsel %vm321, %v417, 0.0
        %v479 = vadd.f32 %v416, %v478
        %480 = vadd.xlane.f32.xlu0 %v479
        %v481 = vpop.xlane.xlu0 %480
        %v482 = vmul.f32 %v325, 0.0051020407
        %v483 = vmul.f32 %v329, 0.0051020407
        %v484 = vmul.f32 %v333, 0.0051020407
        %v485 = vmul.f32 %v337, 0.0051020407
        %v486 = vmul.f32 %v341, 0.0051020407
        %v487 = vmul.f32 %v345, 0.0051020407
        %v488 = vmul.f32 %v349, 0.0051020407
        %v489 = vmul.f32 %v353, 0.0051020407
        %v490 = vmul.f32 %v357, 0.0051020407
        %v491 = vmul.f32 %v361, 0.0051020407
        %v492 = vmul.f32 %v365, 0.0051020407
        %v493 = vmul.f32 %v369, 0.0051020407
        %v494 = vmul.f32 %v373, 0.0051020407
        %v495 = vmul.f32 %v377, 0.0051020407
        %v496 = vmul.f32 %v381, 0.0051020407
        %v497 = vmul.f32 %v385, 0.0051020407
        %v498 = vmul.f32 %v421, 0.0051020407
        %v499 = vmul.f32 %v425, 0.0051020407
        %v500 = vmul.f32 %v429, 0.0051020407
        %v501 = vmul.f32 %v433, 0.0051020407
        %v502 = vmul.f32 %v437, 0.0051020407
        %v503 = vmul.f32 %v441, 0.0051020407
        %v504 = vmul.f32 %v445, 0.0051020407
        %v505 = vmul.f32 %v449, 0.0051020407
        %v506 = vmul.f32 %v453, 0.0051020407
        %v507 = vmul.f32 %v457, 0.0051020407
        %v508 = vmul.f32 %v461, 0.0051020407
        %v509 = vmul.f32 %v465, 0.0051020407
        %v510 = vmul.f32 %v469, 0.0051020407
        %v511 = vmul.f32 %v473, 0.0051020407
        %v512 = vmul.f32 %v477, 0.0051020407
        %v513 = vmul.f32 %v481, 0.0051020407
        %v514 = vmul.f32 %v482, %v482
        %v515 = vmul.f32 %v483, %v483
        %v516 = vmul.f32 %v484, %v484
        %v517 = vmul.f32 %v485, %v485
        %v518 = vmul.f32 %v486, %v486
        %v519 = vmul.f32 %v487, %v487
        %v520 = vmul.f32 %v488, %v488
        %v521 = vmul.f32 %v489, %v489
        %v522 = vmul.f32 %v490, %v490
        %v523 = vmul.f32 %v491, %v491
        %v524 = vmul.f32 %v492, %v492
        %v525 = vmul.f32 %v493, %v493
        %v526 = vmul.f32 %v494, %v494
        %v527 = vmul.f32 %v495, %v495
        %v528 = vmul.f32 %v496, %v496
        %v529 = vmul.f32 %v497, %v497
        %v530 = vsub.f32 %v498, %v514
        %v531 = vsub.f32 %v499, %v515
        %v532 = vsub.f32 %v500, %v516
        %v533 = vsub.f32 %v501, %v517
        %v534 = vsub.f32 %v502, %v518
        %v535 = vsub.f32 %v503, %v519
        %v536 = vsub.f32 %v504, %v520
        %v537 = vsub.f32 %v505, %v521
        %v538 = vsub.f32 %v506, %v522
        %v539 = vsub.f32 %v507, %v523
        %v540 = vsub.f32 %v508, %v524
        %v541 = vsub.f32 %v509, %v525
        %v542 = vsub.f32 %v510, %v526
        %v543 = vsub.f32 %v511, %v527
        %v544 = vsub.f32 %v512, %v528
        %v545 = vsub.f32 %v513, %v529
        %v546 = vmax.f32 %v530, 0.0
        %v547 = vmax.f32 %v531, 0.0
        %v548 = vmax.f32 %v532, 0.0
        %v549 = vmax.f32 %v533, 0.0
        %v550 = vmax.f32 %v534, 0.0
        %v551 = vmax.f32 %v535, 0.0
        %v552 = vmax.f32 %v536, 0.0
        %v553 = vmax.f32 %v537, 0.0
        %v554 = vmax.f32 %v538, 0.0
        %v555 = vmax.f32 %v539, 0.0
        %v556 = vmax.f32 %v540, 0.0
        %v557 = vmax.f32 %v541, 0.0
        %v558 = vmax.f32 %v542, 0.0
        %v559 = vmax.f32 %v543, 0.0
        %v560 = vmax.f32 %v544, 0.0
        %v561 = vmax.f32 %v545, 0.0
        %v562 = vadd.f32 %v546, 0.001
        %v563 = vadd.f32 %v547, 0.001
        %v564 = vadd.f32 %v548, 0.001
        %v565 = vadd.f32 %v549, 0.001
        %v566 = vadd.f32 %v550, 0.001
        %v567 = vadd.f32 %v551, 0.001
        %v568 = vadd.f32 %v552, 0.001
        %v569 = vadd.f32 %v553, 0.001
        %v570 = vadd.f32 %v554, 0.001
        %v571 = vadd.f32 %v555, 0.001
        %v572 = vadd.f32 %v556, 0.001
        %v573 = vadd.f32 %v557, 0.001
        %v574 = vadd.f32 %v558, 0.001
        %v575 = vadd.f32 %v559, 0.001
        %v576 = vadd.f32 %v560, 0.001
        %v577 = vadd.f32 %v561, 0.001
        %v578 = vrsqrt.pop %v562
        %v579 = vmul.f32 %v578, %v562
        %v580 = vmul.f32 %v579, %v578
        %v581 = vmul.f32 0.5, %v580
        %v582 = vsub.f32 1.5, %v581
        %v583 = vmul.f32 %v578, %v582
        %vm584 = vweird.f32 %v562
        %vm585 = vweird.f32 %v578
        %vm586 = vmor %vm584, %vm585
        %v587 = vsel %vm586, %v578, %v583
        %v588 = vrsqrt.pop %v563
        %v589 = vmul.f32 %v588, %v563
        %v590 = vmul.f32 %v589, %v588
        %v591 = vmul.f32 0.5, %v590
        %v592 = vsub.f32 1.5, %v591
        %v593 = vmul.f32 %v588, %v592
        %vm594 = vweird.f32 %v563
        %vm595 = vweird.f32 %v588
        %vm596 = vmor %vm594, %vm595
        %v597 = vsel %vm596, %v588, %v593
        %v598 = vrsqrt.pop %v564
        %v599 = vmul.f32 %v598, %v564
        %v600 = vmul.f32 %v599, %v598
        %v601 = vmul.f32 0.5, %v600
        %v602 = vsub.f32 1.5, %v601
        %v603 = vmul.f32 %v598, %v602
        %vm604 = vweird.f32 %v564
        %vm605 = vweird.f32 %v598
        %vm606 = vmor %vm604, %vm605
        %v607 = vsel %vm606, %v598, %v603
        %v608 = vrsqrt.pop %v565
        %v609 = vmul.f32 %v608, %v565
        %v610 = vmul.f32 %v609, %v608
        %v611 = vmul.f32 0.5, %v610
        %v612 = vsub.f32 1.5, %v611
        %v613 = vmul.f32 %v608, %v612
        %vm614 = vweird.f32 %v565
        %vm615 = vweird.f32 %v608
        %vm616 = vmor %vm614, %vm615
        %v617 = vsel %vm616, %v608, %v613
        %v618 = vrsqrt.pop %v566
        %v619 = vmul.f32 %v618, %v566
        %v620 = vmul.f32 %v619, %v618
        %v621 = vmul.f32 0.5, %v620
        %v622 = vsub.f32 1.5, %v621
        %v623 = vmul.f32 %v618, %v622
        %vm624 = vweird.f32 %v566
        %vm625 = vweird.f32 %v618
        %vm626 = vmor %vm624, %vm625
        %v627 = vsel %vm626, %v618, %v623
        %v628 = vrsqrt.pop %v567
        %v629 = vmul.f32 %v628, %v567
        %v630 = vmul.f32 %v629, %v628
        %v631 = vmul.f32 0.5, %v630
        %v632 = vsub.f32 1.5, %v631
        %v633 = vmul.f32 %v628, %v632
        %vm634 = vweird.f32 %v567
        %vm635 = vweird.f32 %v628
        %vm636 = vmor %vm634, %vm635
        %v637 = vsel %vm636, %v628, %v633
        %v638 = vrsqrt.pop %v568
        %v639 = vmul.f32 %v638, %v568
        %v640 = vmul.f32 %v639, %v638
        %v641 = vmul.f32 0.5, %v640
        %v642 = vsub.f32 1.5, %v641
        %v643 = vmul.f32 %v638, %v642
        %vm644 = vweird.f32 %v568
        %vm645 = vweird.f32 %v638
        %vm646 = vmor %vm644, %vm645
        %v647 = vsel %vm646, %v638, %v643
        %v648 = vrsqrt.pop %v569
        %v649 = vmul.f32 %v648, %v569
        %v650 = vmul.f32 %v649, %v648
        %v651 = vmul.f32 0.5, %v650
        %v652 = vsub.f32 1.5, %v651
        %v653 = vmul.f32 %v648, %v652
        %vm654 = vweird.f32 %v569
        %vm655 = vweird.f32 %v648
        %vm656 = vmor %vm654, %vm655
        %v657 = vsel %vm656, %v648, %v653
        %v658 = vrsqrt.pop %v570
        %v659 = vmul.f32 %v658, %v570
        %v660 = vmul.f32 %v659, %v658
        %v661 = vmul.f32 0.5, %v660
        %v662 = vsub.f32 1.5, %v661
        %v663 = vmul.f32 %v658, %v662
        %vm664 = vweird.f32 %v570
        %vm665 = vweird.f32 %v658
        %vm666 = vmor %vm664, %vm665
        %v667 = vsel %vm666, %v658, %v663
        %v668 = vrsqrt.pop %v571
        %v669 = vmul.f32 %v668, %v571
        %v670 = vmul.f32 %v669, %v668
        %v671 = vmul.f32 0.5, %v670
        %v672 = vsub.f32 1.5, %v671
        %v673 = vmul.f32 %v668, %v672
        %vm674 = vweird.f32 %v571
        %vm675 = vweird.f32 %v668
        %vm676 = vmor %vm674, %vm675
        %v677 = vsel %vm676, %v668, %v673
        %v678 = vrsqrt.pop %v572
        %v679 = vmul.f32 %v678, %v572
        %v680 = vmul.f32 %v679, %v678
        %v681 = vmul.f32 0.5, %v680
        %v682 = vsub.f32 1.5, %v681
        %v683 = vmul.f32 %v678, %v682
        %vm684 = vweird.f32 %v572
        %vm685 = vweird.f32 %v678
        %vm686 = vmor %vm684, %vm685
        %v687 = vsel %vm686, %v678, %v683
        %v688 = vrsqrt.pop %v573
        %v689 = vmul.f32 %v688, %v573
        %v690 = vmul.f32 %v689, %v688
        %v691 = vmul.f32 0.5, %v690
        %v692 = vsub.f32 1.5, %v691
        %v693 = vmul.f32 %v688, %v692
        %vm694 = vweird.f32 %v573
        %vm695 = vweird.f32 %v688
        %vm696 = vmor %vm694, %vm695
        %v697 = vsel %vm696, %v688, %v693
        %v698 = vrsqrt.pop %v574
        %v699 = vmul.f32 %v698, %v574
        %v700 = vmul.f32 %v699, %v698
        %v701 = vmul.f32 0.5, %v700
        %v702 = vsub.f32 1.5, %v701
        %v703 = vmul.f32 %v698, %v702
        %vm704 = vweird.f32 %v574
        %vm705 = vweird.f32 %v698
        %vm706 = vmor %vm704, %vm705
        %v707 = vsel %vm706, %v698, %v703
        %v708 = vrsqrt.pop %v575
        %v709 = vmul.f32 %v708, %v575
        %v710 = vmul.f32 %v709, %v708
        %v711 = vmul.f32 0.5, %v710
        %v712 = vsub.f32 1.5, %v711
        %v713 = vmul.f32 %v708, %v712
        %vm714 = vweird.f32 %v575
        %vm715 = vweird.f32 %v708
        %vm716 = vmor %vm714, %vm715
        %v717 = vsel %vm716, %v708, %v713
        %v718 = vrsqrt.pop %v576
        %v719 = vmul.f32 %v718, %v576
        %v720 = vmul.f32 %v719, %v718
        %v721 = vmul.f32 0.5, %v720
        %v722 = vsub.f32 1.5, %v721
        %v723 = vmul.f32 %v718, %v722
        %vm724 = vweird.f32 %v576
        %vm725 = vweird.f32 %v718
        %vm726 = vmor %vm724, %vm725
        %v727 = vsel %vm726, %v718, %v723
        %v728 = vrsqrt.pop %v577
        %v729 = vmul.f32 %v728, %v577
        %v730 = vmul.f32 %v729, %v728
        %v731 = vmul.f32 0.5, %v730
        %v732 = vsub.f32 1.5, %v731
        %v733 = vmul.f32 %v728, %v732
        %vm734 = vweird.f32 %v577
        %vm735 = vweird.f32 %v728
        %vm736 = vmor %vm734, %vm735
        %v737 = vsel %vm736, %v728, %v733
        %v738 = vld [vmem:[%s263] sm:$0xff]
        %v739 = vld [vmem:[%s263 + $0x8] sm:$0xff]
        %v740 = vld [vmem:[%s263 + $0x10] sm:$0xff]
        %v741 = vld [vmem:[%s263 + $0x18] sm:$0xff]
        %v742 = vld [vmem:[%s263 + $0x20] sm:$0xff]
        %v743 = vld [vmem:[%s263 + $0x28] sm:$0xff]
        %v744 = vld [vmem:[%s263 + $0x30] sm:$0xff]
        %v745 = vld [vmem:[%s263 + $0x38] sm:$0xff]
        %v746 = vld [vmem:[%s263 + $0x40] sm:$0xff]
        %v747 = vld [vmem:[%s263 + $0x48] sm:$0xff]
        %v748 = vld [vmem:[%s263 + $0x50] sm:$0xff]
        %v749 = vld [vmem:[%s263 + $0x58] sm:$0xff]
        %v750 = vld [vmem:[%s263 + $0x60] sm:$0xff]
        %v751 = vld [vmem:[%s263 + $0x68] sm:$0xff]
        %v752 = vld [vmem:[%s263 + $0x70] sm:$0xff]
        %v753 = vld [vmem:[%s263 + $0x78] sm:$0xff]
        %v754 = vmul.f32 %v587, %v738
        %v755 = vmul.f32 %v597, %v739
        %v756 = vmul.f32 %v607, %v740
        %v757 = vmul.f32 %v617, %v741
        %v758 = vmul.f32 %v627, %v742
        %v759 = vmul.f32 %v637, %v743
        %v760 = vmul.f32 %v647, %v744
        %v761 = vmul.f32 %v657, %v745
        %v762 = vmul.f32 %v667, %v746
        %v763 = vmul.f32 %v677, %v747
        %v764 = vmul.f32 %v687, %v748
        %v765 = vmul.f32 %v697, %v749
        %v766 = vmul.f32 %v707, %v750
        %v767 = vmul.f32 %v717, %v751
        %v768 = vmul.f32 %v727, %v752
        %v769 = vmul.f32 %v737, %v753
        %v770 = vld [vmem:[%s277] sm:$0xff]
        %v771 = vld [vmem:[%s277 + $0x8] sm:$0xff]
        %v772 = vld [vmem:[%s277 + $0x10] sm:$0xff]
        %v773 = vld [vmem:[%s277 + $0x18] sm:$0xff]
        %v774 = vld [vmem:[%s277 + $0x20] sm:$0xff]
        %v775 = vld [vmem:[%s277 + $0x28] sm:$0xff]
        %v776 = vld [vmem:[%s277 + $0x30] sm:$0xff]
        %v777 = vld [vmem:[%s277 + $0x38] sm:$0xff]
        %v778 = vld [vmem:[%s277 + $0x40] sm:$0xff]
        %v779 = vld [vmem:[%s277 + $0x48] sm:$0xff]
        %v780 = vld [vmem:[%s277 + $0x50] sm:$0xff]
        %v781 = vld [vmem:[%s277 + $0x58] sm:$0xff]
        %v782 = vld [vmem:[%s277 + $0x60] sm:$0xff]
        %v783 = vld [vmem:[%s277 + $0x68] sm:$0xff]
        %v784 = vld [vmem:[%s277 + $0x70] sm:$0xff]
        %v785 = vld [vmem:[%s277 + $0x78] sm:$0xff]
        %v786 = vmul.f32 %v482, %v754
        %v787 = vmul.f32 %v483, %v755
        %v788 = vmul.f32 %v484, %v756
        %v789 = vmul.f32 %v485, %v757
        %v790 = vmul.f32 %v486, %v758
        %v791 = vmul.f32 %v487, %v759
        %v792 = vmul.f32 %v488, %v760
        %v793 = vmul.f32 %v489, %v761
        %v794 = vmul.f32 %v490, %v762
        %v795 = vmul.f32 %v491, %v763
        %v796 = vmul.f32 %v492, %v764
        %v797 = vmul.f32 %v493, %v765
        %v798 = vmul.f32 %v494, %v766
        %v799 = vmul.f32 %v495, %v767
        %v800 = vmul.f32 %v496, %v768
        %v801 = vmul.f32 %v497, %v769
        %v802 = vsub.f32 %v770, %v786
        %v803 = vsub.f32 %v771, %v787
        %v804 = vsub.f32 %v772, %v788
        %v805 = vsub.f32 %v773, %v789
        %v806 = vsub.f32 %v774, %v790
        %v807 = vsub.f32 %v775, %v791
        %v808 = vsub.f32 %v776, %v792
        %v809 = vsub.f32 %v777, %v793
        %v810 = vsub.f32 %v778, %v794
        %v811 = vsub.f32 %v779, %v795
        %v812 = vsub.f32 %v780, %v796
        %v813 = vsub.f32 %v781, %v797
        %v814 = vsub.f32 %v782, %v798
        %v815 = vsub.f32 %v783, %v799
        %v816 = vsub.f32 %v784, %v800
        %v817 = vsub.f32 %v785, %v801
        %819 = vset.pattern.permute.xlu0 0
        %820 = vperm.xlu0 %819, %v754
        %v821 = vpop.permute.xlu0 %820
        %824 = vset.pattern.permute.xlu0 0
        %825 = vperm.xlu0 %824, %v755
        %v826 = vpop.permute.xlu0 %825
        %829 = vset.pattern.permute.xlu0 0
        %830 = vperm.xlu0 %829, %v756
        %v831 = vpop.permute.xlu0 %830
        %834 = vset.pattern.permute.xlu0 0
        %835 = vperm.xlu0 %834, %v757
        %v836 = vpop.permute.xlu0 %835
        %839 = vset.pattern.permute.xlu0 0
        %840 = vperm.xlu0 %839, %v758
        %v841 = vpop.permute.xlu0 %840
        %844 = vset.pattern.permute.xlu0 0
        %845 = vperm.xlu0 %844, %v759
        %v846 = vpop.permute.xlu0 %845
        %849 = vset.pattern.permute.xlu0 0
        %850 = vperm.xlu0 %849, %v760
        %v851 = vpop.permute.xlu0 %850
        %854 = vset.pattern.permute.xlu0 0
        %855 = vperm.xlu0 %854, %v761
        %v856 = vpop.permute.xlu0 %855
        %859 = vset.pattern.permute.xlu0 0
        %860 = vperm.xlu0 %859, %v762
        %v861 = vpop.permute.xlu0 %860
        %864 = vset.pattern.permute.xlu0 0
        %865 = vperm.xlu0 %864, %v763
        %v866 = vpop.permute.xlu0 %865
        %869 = vset.pattern.permute.xlu0 0
        %870 = vperm.xlu0 %869, %v764
        %v871 = vpop.permute.xlu0 %870
        %874 = vset.pattern.permute.xlu0 0
        %875 = vperm.xlu0 %874, %v765
        %v876 = vpop.permute.xlu0 %875
        %879 = vset.pattern.permute.xlu0 0
        %880 = vperm.xlu0 %879, %v766
        %v881 = vpop.permute.xlu0 %880
        %884 = vset.pattern.permute.xlu0 0
        %885 = vperm.xlu0 %884, %v767
        %v886 = vpop.permute.xlu0 %885
        %889 = vset.pattern.permute.xlu0 0
        %890 = vperm.xlu0 %889, %v768
        %v891 = vpop.permute.xlu0 %890
        %894 = vset.pattern.permute.xlu0 0
        %895 = vperm.xlu0 %894, %v769
        %v896 = vpop.permute.xlu0 %895
        %v898 = vmul.f32 %v289, %v821
        %v899 = vmul.f32 %v290, %v821
        %v900 = vmul.f32 %v291, %v826
        %v901 = vmul.f32 %v292, %v826
        %v902 = vmul.f32 %v293, %v831
        %v903 = vmul.f32 %v294, %v831
        %v904 = vmul.f32 %v295, %v836
        %v905 = vmul.f32 %v296, %v836
        %v906 = vmul.f32 %v297, %v841
        %v907 = vmul.f32 %v298, %v841
        %v908 = vmul.f32 %v299, %v846
        %v909 = vmul.f32 %v300, %v846
        %v910 = vmul.f32 %v301, %v851
        %v911 = vmul.f32 %v302, %v851
        %v912 = vmul.f32 %v303, %v856
        %v913 = vmul.f32 %v304, %v856
        %v914 = vmul.f32 %v305, %v861
        %v915 = vmul.f32 %v306, %v861
        %v916 = vmul.f32 %v307, %v866
        %v917 = vmul.f32 %v308, %v866
        %v918 = vmul.f32 %v309, %v871
        %v919 = vmul.f32 %v310, %v871
        %v920 = vmul.f32 %v311, %v876
        %v921 = vmul.f32 %v312, %v876
        %v922 = vmul.f32 %v313, %v881
        %v923 = vmul.f32 %v314, %v881
        %v924 = vmul.f32 %v315, %v886
        %v925 = vmul.f32 %v316, %v886
        %v926 = vmul.f32 %v317, %v891
        %v927 = vmul.f32 %v318, %v891
        %v928 = vmul.f32 %v319, %v896
        %v929 = vmul.f32 %v320, %v896
        %931 = vset.pattern.permute.xlu0 0
        %932 = vperm.xlu0 %931, %v802
        %v933 = vpop.permute.xlu0 %932
        %936 = vset.pattern.permute.xlu0 0
        %937 = vperm.xlu0 %936, %v803
        %v938 = vpop.permute.xlu0 %937
        %941 = vset.pattern.permute.xlu0 0
        %942 = vperm.xlu0 %941, %v804
        %v943 = vpop.permute.xlu0 %942
        %946 = vset.pattern.permute.xlu0 0
        %947 = vperm.xlu0 %946, %v805
        %v948 = vpop.permute.xlu0 %947
        %951 = vset.pattern.permute.xlu0 0
        %952 = vperm.xlu0 %951, %v806
        %v953 = vpop.permute.xlu0 %952
        %956 = vset.pattern.permute.xlu0 0
        %957 = vperm.xlu0 %956, %v807
        %v958 = vpop.permute.xlu0 %957
        %961 = vset.pattern.permute.xlu0 0
        %962 = vperm.xlu0 %961, %v808
        %v963 = vpop.permute.xlu0 %962
        %966 = vset.pattern.permute.xlu0 0
        %967 = vperm.xlu0 %966, %v809
        %v968 = vpop.permute.xlu0 %967
        %971 = vset.pattern.permute.xlu0 0
        %972 = vperm.xlu0 %971, %v810
        %v973 = vpop.permute.xlu0 %972
        %976 = vset.pattern.permute.xlu0 0
        %977 = vperm.xlu0 %976, %v811
        %v978 = vpop.permute.xlu0 %977
        %981 = vset.pattern.permute.xlu0 0
        %982 = vperm.xlu0 %981, %v812
        %v983 = vpop.permute.xlu0 %982
        %986 = vset.pattern.permute.xlu0 0
        %987 = vperm.xlu0 %986, %v813
        %v988 = vpop.permute.xlu0 %987
        %991 = vset.pattern.permute.xlu0 0
        %992 = vperm.xlu0 %991, %v814
        %v993 = vpop.permute.xlu0 %992
        %996 = vset.pattern.permute.xlu0 0
        %997 = vperm.xlu0 %996, %v815
        %v998 = vpop.permute.xlu0 %997
        %1001 = vset.pattern.permute.xlu0 0
        %1002 = vperm.xlu0 %1001, %v816
        %v1003 = vpop.permute.xlu0 %1002
        %1006 = vset.pattern.permute.xlu0 0
        %1007 = vperm.xlu0 %1006, %v817
        %v1008 = vpop.permute.xlu0 %1007
        %v1010 = vadd.f32 %v898, %v933
        %v1011 = vadd.f32 %v899, %v933
        %v1012 = vadd.f32 %v900, %v938
        %v1013 = vadd.f32 %v901, %v938
        %v1014 = vadd.f32 %v902, %v943
        %v1015 = vadd.f32 %v903, %v943
        %v1016 = vadd.f32 %v904, %v948
        %v1017 = vadd.f32 %v905, %v948
        %v1018 = vadd.f32 %v906, %v953
        %v1019 = vadd.f32 %v907, %v953
        %v1020 = vadd.f32 %v908, %v958
        %v1021 = vadd.f32 %v909, %v958
        %v1022 = vadd.f32 %v910, %v963
        %v1023 = vadd.f32 %v911, %v963
        %v1024 = vadd.f32 %v912, %v968
        %v1025 = vadd.f32 %v913, %v968
        %v1026 = vadd.f32 %v914, %v973
        %v1027 = vadd.f32 %v915, %v973
        %v1028 = vadd.f32 %v916, %v978
        %v1029 = vadd.f32 %v917, %v978
        %v1030 = vadd.f32 %v918, %v983
        %v1031 = vadd.f32 %v919, %v983
        %v1032 = vadd.f32 %v920, %v988
        %v1033 = vadd.f32 %v921, %v988
        %v1034 = vadd.f32 %v922, %v993
        %v1035 = vadd.f32 %v923, %v993
        %v1036 = vadd.f32 %v924, %v998
        %v1037 = vadd.f32 %v925, %v998
        %v1038 = vadd.f32 %v926, %v1003
        %v1039 = vadd.f32 %v927, %v1003
        %v1040 = vadd.f32 %v928, %v1008
        %v1041 = vadd.f32 %v929, %v1008
        %1042 = vst [vmem:[%s237] sm:$0xff] %v1010
        %1043 = vst.msk [vmem:[%s237 + $0x8] sm:$0xff] %vm321, %v1011
        %1044 = vst [vmem:[%s237 + $0x10] sm:$0xff] %v1012
        %1045 = vst.msk [vmem:[%s237 + $0x18] sm:$0xff] %vm321, %v1013
        %1046 = vst [vmem:[%s237 + $0x20] sm:$0xff] %v1014
        %1047 = vst.msk [vmem:[%s237 + $0x28] sm:$0xff] %vm321, %v1015
        %1048 = vst [vmem:[%s237 + $0x30] sm:$0xff] %v1016
        %1049 = vst.msk [vmem:[%s237 + $0x38] sm:$0xff] %vm321, %v1017
        %1050 = vst [vmem:[%s237 + $0x40] sm:$0xff] %v1018
        %1051 = vst.msk [vmem:[%s237 + $0x48] sm:$0xff] %vm321, %v1019
        %1052 = vst [vmem:[%s237 + $0x50] sm:$0xff] %v1020
        %1053 = vst.msk [vmem:[%s237 + $0x58] sm:$0xff] %vm321, %v1021
        %1054 = vst [vmem:[%s237 + $0x60] sm:$0xff] %v1022
        %1055 = vst.msk [vmem:[%s237 + $0x68] sm:$0xff] %vm321, %v1023
        %1056 = vst [vmem:[%s237 + $0x70] sm:$0xff] %v1024
        %1057 = vst.msk [vmem:[%s237 + $0x78] sm:$0xff] %vm321, %v1025
        %1058 = vst [vmem:[%s237 + $0x80] sm:$0xff] %v1026
        %1059 = vst.msk [vmem:[%s237 + $0x88] sm:$0xff] %vm321, %v1027
        %1060 = vst [vmem:[%s237 + $0x90] sm:$0xff] %v1028
        %1061 = vst.msk [vmem:[%s237 + $0x98] sm:$0xff] %vm321, %v1029
        %1062 = vst [vmem:[%s237 + $0xa0] sm:$0xff] %v1030
        %1063 = vst.msk [vmem:[%s237 + $0xa8] sm:$0xff] %vm321, %v1031
        %1064 = vst [vmem:[%s237 + $0xb0] sm:$0xff] %v1032
        %1065 = vst.msk [vmem:[%s237 + $0xb8] sm:$0xff] %vm321, %v1033
        %1066 = vst [vmem:[%s237 + $0xc0] sm:$0xff] %v1034
        %1067 = vst.msk [vmem:[%s237 + $0xc8] sm:$0xff] %vm321, %v1035
        %1068 = vst [vmem:[%s237 + $0xd0] sm:$0xff] %v1036
        %1069 = vst.msk [vmem:[%s237 + $0xd8] sm:$0xff] %vm321, %v1037
        %1070 = vst [vmem:[%s237 + $0xe0] sm:$0xff] %v1038
        %1071 = vst.msk [vmem:[%s237 + $0xe8] sm:$0xff] %vm321, %v1039
        %1072 = vst [vmem:[%s237 + $0xf0] sm:$0xff] %v1040
        %1073 = vst.msk [vmem:[%s237 + $0xf8] sm:$0xff] %vm321, %v1041
        %s1074 = sand.u32 %s103, 1
        %s1075 = scalar_lea.sflag [#allocation3], %s1074
        %s1076 = sand.u32 %s103, 1
        %s1077 = smul.addr %s1076, 256
        %s1078 = scalar_lea.vmem [#allocation2], %s1077
        // Predicated region
        $region33: #{tpu_custom_call.1} parent=31 // pred_check
          %p1079 = pneg %p113
        $region34: #{tpu_custom_call.1} parent=31 // pred_check_branch
          %1081 = sbr.rel (%p1079) target = $region36
        $region35: #{tpu_custom_call.1} parent=31 // pred_region
          %s1082 = smul.u32 16, %s17
          %s1083 = ssub.s32 25, %s1082
          %p1084 = scmp.lt.s32.totalorder %s1083, 16
          %s1085 = scalar_select %p1084, %s1083, 16
          %s1086 = smul.u32 8, %s1085
          %s1087 = smul.u32 %s1086, 2
          %s1088 = ssub.s32 256, %s1087
          %s1089 = sshll.u32 %s1088, 4
          %1090 = vsyncadd %s1075, %s1089
          %p1091 = scmp.ne.s32.totalorder 0, %s1087
          %s1092 = smul.addr %s1082, 2
          %s1093 = smul.addr %s1092, 8
          %s1094 = scalar_lea.hbm %s3, %s1093
          %s1095 = smul.u32 16, %s1085
          %s1096 = sshll.u32 %s1078, 4
          %s1097 = int_to_ptr.vmem [resolvable:$true] %s1096
          %s1098 = sshll.u32 %s1094, 4
          %s1099 = int_to_ptr.hbm [resolvable:$true] %s1098
          %s1100 = sshll.u32 %s1095, 4
          %1104 = dma.vmem_to_hbm [thread:$0]  (%p1091), %s1097, %s1100, %s1099, %s1075, 256, 256, 16
        $region36: #{tpu_custom_call.1} parent=31 // pred_fallthru
          _
      $region32: #{tpu_custom_call.1} parent=5 // pred_fallthru
        _
      %p1105 = scmp.le.s32.totalorder 2, %s12
      // Predicated region
      $region37: #{tpu_custom_call.1} parent=5 // pred_check
        %p1106 = pneg %p1105
      $region38: #{tpu_custom_call.1} parent=5 // pred_check_branch
        %1108 = sbr.rel (%p1106) target = $region40
      $region39: #{tpu_custom_call.1} parent=5 // pred_region
        %s1109 = ssub.s32 %s12, 2
        // Predicated region
        $region41: #{tpu_custom_call.1} parent=39 // pred_check
          %p1110 = pneg %p119
        $region42: #{tpu_custom_call.1} parent=39 // pred_check_branch
          %1112 = sbr.rel (%p1110) target = $region44
        $region43: #{tpu_custom_call.1} parent=39 // pred_region
          %s1113 = sand.u32 %s104, 1
          %s1114 = scalar_lea.sflag [#allocation3], %s1113
          %s1115 = sand.u32 %s104, 1
          %s1116 = smul.addr %s1115, 256
          %s1117 = scalar_lea.vmem [#allocation2], %s1116
          %1119 = dma.done %s1114, 4096
        $region44: #{tpu_custom_call.1} parent=39 // pred_fallthru
          _
      $region40: #{tpu_custom_call.1} parent=5 // pred_fallthru
        _
    $region6: #{tpu_custom_call.1} parent=1 // loop_footer
      %s16 = sadd.s32 1, %s12
    $region7: #{tpu_custom_call.1} parent=1 // loop_footer_branch
      %11 = sbr.rel target = $region3
    $region8: #{tpu_custom_call.1} parent=1 // loop_exit
      _
    %1120 = vsyncpa [#allocation3], 1
    %s1121 = scalar_lea.sflag [#allocation3], 1
    %1122 = vsyncpa %s1121, 1

</llo_original>
